<compile_context>
chip_gen: v7x
topology: tpu7x:2x2x1
jax: 0.10.0
libtpu: 0.0.40
codegen_flags: <defaults>
</compile_context>

<pallas_src>
import jax
import jax.numpy as jnp
from jax import lax
from jax.experimental import pallas as pl
from jax.experimental.pallas import tpu as pltpu

LN_EPS = 1e-5   # torch.nn.LayerNorm default
FM_EPS = 1e-6   # feature_map / Z epsilon


# --------------------------- VMEM limit per chip -----------------------------
def _default_vmem_limit():
    try:
        info = pltpu.get_tpu_info()
        cap = int(getattr(info, "vmem_capacity_bytes", 0))
        if cap > 0:
            return max(32 * 1024 * 1024, int(cap * 0.85))
    except Exception:
        pass
    return 64 * 1024 * 1024


# --------------------------- pass 1: KV / Ksum ------------------------------
def _make_kv_kernel(block_n, nt_per_split, n_valid, masked):
    def kernel(x_ref, wkv_ref, bkv_ref, kv_ref, ksum_ref):
        s = pl.program_id(0)                   # split index (parallel)
        t = pl.program_id(2)                   # sequence-tile index (reduction)
        d_model = ksum_ref.shape[-1]

        x = x_ref[0]                           # (TN, D) compute dtype
        # Fused K|V projection: one (TN, D) @ (D, 2D) MXU matmul, f32 accumulation.
        kvp = jnp.dot(x, wkv_ref[...], preferred_element_type=jnp.float32) + bkv_ref[...]
        k = jnp.maximum(kvp[:, :d_model], 0.0) + FM_EPS      # feature map (f32)
        v = kvp[:, d_model:]                                  # (TN, D) f32

        if masked:
            # Zero padded rows of K: kills their contribution to both KV and Ksum.
            tile = s * nt_per_split + t
            row = tile * block_n + lax.broadcasted_iota(jnp.int32, (block_n, 1), 0)
            k = jnp.where(row < n_valid, k, 0.0)

        # K^T @ V without materializing a transpose: contract over the row axis.
        kv_tile = lax.dot_general(
            k.astype(x.dtype), v.astype(x.dtype),
            dimension_numbers=(((0,), (0,)), ((), ())),
            preferred_element_type=jnp.float32)               # (D, D) f32
        ksum_tile = jnp.sum(k, axis=0, keepdims=True)         # (1, D) f32

        @pl.when(t == 0)
        def _():
            kv_ref[0, 0] = kv_tile
            ksum_ref[0, 0] = ksum_tile

        @pl.when(t != 0)
        def _():
            kv_ref[0, 0] += kv_tile
            ksum_ref[0, 0] += ksum_tile

    return kernel


# ------------------- pass 2: attention out + FFN + norms --------------------
def _out_kernel(x_ref, kv_ref, ksum_ref,
                wq_ref, bq_ref, w1_ref, b1_ref, w2_ref, b2_ref,
                g1_ref, beta1_ref, g2_ref, beta2_ref,
                o_ref):
    x = x_ref[0]                               # (TN, D) compute dtype
    cdt = x.dtype

    # Q projection + feature map (element-wise math in f32).
    q = jnp.maximum(
        jnp.dot(x, wq_ref[...], preferred_element_type=jnp.float32) + bq_ref[...],
        0.0) + FM_EPS                                          # (TN, D) f32

    ksum = ksum_ref[0]                                         # (1, D) f32
    den = jnp.sum(q * ksum, axis=-1, keepdims=True) + FM_EPS   # (TN, 1) f32
    r = pl.reciprocal(den, approx=True)                        # EUP slot
    z = r * (2.0 - den * r)                                    # one Newton step

    # KV already cast to compute dtype in the wrapper (grid-invariant).
    attn = jnp.dot(q.astype(cdt), kv_ref[0],
                   preferred_element_type=jnp.float32) * z     # (TN, D) f32

    def layer_norm(h, g_ref, b_ref):
        # Single-pass statistics: var = E[h^2] - mu^2.
        mu = jnp.mean(h, axis=-1, keepdims=True)
        ms = jnp.mean(h * h, axis=-1, keepdims=True)
        var = jnp.maximum(ms - mu * mu, 0.0)
        return (h - mu) * lax.rsqrt(var + LN_EPS) * g_ref[...] + b_ref[...]

    # residual + norm1 (x cast to f32 only here, no duplicate xf copy)
    s = layer_norm(x.astype(jnp.float32) + attn, g1_ref, beta1_ref)   # (TN, D) f32

    # feed-forward: hidden activation kept in compute dtype right after ReLU
    h = jnp.maximum(
        jnp.dot(s.astype(cdt), w1_ref[...], preferred_element_type=jnp.float32)
        + b1_ref[...], 0.0).astype(cdt)                        # (TN, Dff) cdt
    ff = jnp.dot(h, w2_ref[...], preferred_element_type=jnp.float32) + b2_ref[...]

    # residual + norm2
    o_ref[0] = layer_norm(s + ff, g2_ref, beta2_ref).astype(o_ref.dtype)


# --------------------------------- wrapper ----------------------------------
def _pick_block_n(n):
    if n <= 512:
        return n
    for cand in (512, 384, 256, 128):
        if n % cand == 0:
            return cand
    return 512  # pad + mask


def linear_transformer_encoder_layer(src, params, *, block_n=None,
                                     compute_dtype=jnp.bfloat16,
                                     vmem_limit_bytes=None):
    B, N, D = src.shape
    Dff = params["w1"].shape[1]
    f32 = jnp.float32

    if vmem_limit_bytes is None:
        vmem_limit_bytes = _default_vmem_limit()
    if block_n is None:
        block_n = _pick_block_n(N)

    n_pad = -(-N // block_n) * block_n
    nt = n_pad // block_n
    masked = n_pad != N

    # 2-way split over sequence tiles keeps both v7x TensorCores busy for B==1.
    n_split = 2 if (nt >= 2 and nt % 2 == 0) else 1
    nt_s = nt // n_split

    x = src.astype(compute_dtype)
    if masked:
        x = jnp.pad(x, ((0, 0), (0, n_pad - N), (0, 0)))

    # Fused K|V weights (pass 1). Biases / LayerNorm params stay f32.
    wkv = jnp.concatenate([params["wk"], params["wv"]], axis=1).astype(compute_dtype)
    bkv = jnp.concatenate([params["bk"], params["bv"]], axis=1).astype(f32)
    wq = params["wq"].astype(compute_dtype)
    bq = params["bq"].astype(f32)
    w1 = params["w1"].astype(compute_dtype)
    b1 = params["b1"].astype(f32)
    w2 = params["w2"].astype(compute_dtype)
    b2 = params["b2"].astype(f32)
    g1 = params["g1"].astype(f32)
    beta1 = params["beta1"].astype(f32)
    g2 = params["g2"].astype(f32)
    beta2 = params["beta2"].astype(f32)

    # Whole-array VMEM operands: resident for the whole grid, single copy.
    vmem_spec = pl.BlockSpec(memory_space=pltpu.MemorySpace.VMEM)
    isz = jnp.dtype(compute_dtype).itemsize

    # ---------------- pass 1: partial KV / Ksum ----------------
    x_map_p1 = lambda s, b, t: (b, s * nt_s + t, 0)
    kv_cost = pl.CostEstimate(
        flops=int(2 * B * n_pad * D * (2 * D) + 2 * B * n_pad * D * D),
        transcendentals=0,
        bytes_accessed=int(B * n_pad * D * isz + (wkv.size + bkv.size) * isz
                           + n_split * B * (D * D + D) * 4))

    def run_pass1(x_spec):
        return pl.pallas_call(
            _make_kv_kernel(block_n, nt_s, N, masked),
            out_shape=(jax.ShapeDtypeStruct((n_split, B, D, D), f32),
                       jax.ShapeDtypeStruct((n_split, B, 1, D), f32)),
            grid_spec=pltpu.PrefetchScalarGridSpec(
                num_scalar_prefetch=0,
                grid=(n_split, B, nt_s),
                in_specs=[x_spec, vmem_spec, vmem_spec],
                out_specs=(
                    pl.BlockSpec((1, 1, D, D), lambda s, b, t: (s, b, 0, 0)),
                    pl.BlockSpec((1, 1, 1, D), lambda s, b, t: (s, b, 0, 0)),
                )),
            compiler_params=pltpu.CompilerParams(
                dimension_semantics=("parallel", "parallel", "arbitrary"),
                vmem_limit_bytes=vmem_limit_bytes),
            cost_estimate=kv_cost,
        )(x, wkv, bkv)

    plain_x_spec = pl.BlockSpec((1, block_n, D), x_map_p1)
    deep_x_spec = None
    if n_split * B * nt_s >= 3:
        try:
            # Deeper input buffering on the memory-bound KV reduction.
            deep_x_spec = pl.BlockSpec((1, block_n, D), x_map_p1,
                                       pipeline_mode=pl.Buffered(3))
        except Exception:
            deep_x_spec = None

    if deep_x_spec is not None:
        try:
            kv_p, ksum_p = run_pass1(deep_x_spec)
        except Exception:
            kv_p, ksum_p = run_pass1(plain_x_spec)
    else:
        kv_p, ksum_p = run_pass1(plain_x_spec)

    if n_split > 1:
        kv = jnp.sum(kv_p, axis=0)          # combine the two core-partials
        ksum = jnp.sum(ksum_p, axis=0)
    else:
        kv = kv_p[0]
        ksum = ksum_p[0]
    # Grid-invariant cast hoisted out of the pass-2 loop.
    kv = kv.astype(compute_dtype)

    # ---------------- pass 2: attention out + FFN + norms ----------------
    out_cost = pl.CostEstimate(
        flops=int(2 * B * n_pad * D * D        # Q projection
                  + 2 * B * n_pad * D * D      # Q @ KV
                  + 2 * B * n_pad * D          # Z denominator
                  + 4 * B * n_pad * D * Dff),  # FFN
        transcendentals=int(3 * B * n_pad),
        bytes_accessed=int(2 * B * n_pad * D * max(isz, 4) + B * D * D * isz + B * D * 4
                           + (wq.size + w1.size + w2.size) * isz
                           + (bq.size + b1.size + b2.size + 4 * D) * 4))
    out = pl.pallas_call(
        _out_kernel,
        out_shape=jax.ShapeDtypeStruct((B, n_pad, D), src.dtype),
        grid_spec=pltpu.PrefetchScalarGridSpec(
            num_scalar_prefetch=0,
            grid=(B, nt),
            in_specs=[
                pl.BlockSpec((1, block_n, D), lambda b, t: (b, t, 0)),   # src tile
                pl.BlockSpec((1, D, D), lambda b, t: (b, 0, 0)),         # KV (per batch)
                pl.BlockSpec((1, 1, D), lambda b, t: (b, 0, 0)),         # Ksum (per batch)
                vmem_spec, vmem_spec,      # wq, bq
                vmem_spec, vmem_spec,      # w1, b1
                vmem_spec, vmem_spec,      # w2, b2
                vmem_spec, vmem_spec,      # g1, beta1
                vmem_spec, vmem_spec,      # g2, beta2
            ],
            out_specs=pl.BlockSpec((1, block_n, D), lambda b, t: (b, t, 0))),
        compiler_params=pltpu.CompilerParams(
            dimension_semantics=("parallel", "parallel"),
            vmem_limit_bytes=vmem_limit_bytes),
        cost_estimate=out_cost,
    )(x, kv, ksum, wq, bq, w1, b1, w2, b2, g1, beta1, g2, beta2)

    if masked:
        out = out[:, :N, :]
    return out


# ------------------------- pure-JAX reference ------------------------------
def reference_forward(src, p):
    x = src.astype(jnp.float32)
    q = jnp.maximum(x @ p["wq"] + p["bq"], 0.0) + FM_EPS
    k = jnp.maximum(x @ p["wk"] + p["bk"], 0.0) + FM_EPS
    v = x @ p["wv"] + p["bv"]
    kv = jnp.einsum("bnd,bne->bde", k, v)
    z = 1.0 / (jnp.einsum("bnd,bd->bn", q, k.sum(axis=1)) + FM_EPS)
    attn = jnp.einsum("bnd,bde,bn->bne", q, kv, z)

    def ln(h, g, b):
        mu = h.mean(-1, keepdims=True)
        var = ((h - mu) ** 2).mean(-1, keepdims=True)
        return (h - mu) * lax.rsqrt(var + LN_EPS) * g + b

    s = ln(x + attn, p["g1"], p["beta1"])
    ff = jnp.maximum(s @ p["w1"] + p["b1"], 0.0) @ p["w2"] + p["b2"]
    return ln(s + ff, p["g2"], p["beta2"])


def make_params(key, d_model, dim_feedforward):
    ks = jax.random.split(key, 10)
    scale = 0.1
    return {
        "wq": scale * jax.random.normal(ks[0], (d_model, d_model), jnp.float32),
        "bq": scale * jax.random.normal(ks[1], (1, d_model), jnp.float32),
        "wk": scale * jax.random.normal(ks[2], (d_model, d_model), jnp.float32),
        "bk": scale * jax.random.normal(ks[3], (1, d_model), jnp.float32),
        "wv": scale * jax.random.normal(ks[4], (d_model, d_model), jnp.float32),
        "bv": scale * jax.random.normal(ks[5], (1, d_model), jnp.float32),
        "w1": scale * jax.random.normal(ks[6], (d_model, dim_feedforward), jnp.float32),
        "b1": scale * jax.random.normal(ks[7], (1, dim_feedforward), jnp.float32),
        "w2": scale * jax.random.normal(ks[8], (dim_feedforward, d_model), jnp.float32),
        "b2": scale * jax.random.normal(ks[9], (1, d_model), jnp.float32),
        "g1": jnp.ones((1, d_model), jnp.float32),
        "beta1": jnp.zeros((1, d_model), jnp.float32),
        "g2": jnp.ones((1, d_model), jnp.float32),
        "beta2": jnp.zeros((1, d_model), jnp.float32),
    }


if __name__ == "__main__":
    # Small but lane/sublane-aligned shapes (D, Dff multiples of 128).
    B, N, D, DFF = 2, 32, 128, 256
    key = jax.random.PRNGKey(0)
    k_x, k_p = jax.random.split(key)
    src = jax.random.normal(k_x, (B, N, D), jnp.float32)
    params = make_params(k_p, D, DFF)

    ref = reference_forward(src, params)

    # 1) default path: bf16 MXU operands, f32 accumulation (single N tile).
    out_bf16 = jax.block_until_ready(linear_transformer_encoder_layer(src, params))
    assert out_bf16.shape == (B, N, D)
    assert jnp.allclose(out_bf16.astype(jnp.float32), ref, atol=2e-1, rtol=2e-1), \
        "bf16 kernel mismatch vs reference"

    # 2) f32 MXU operands (tighter parity check).
    out_f32 = jax.block_until_ready(
        linear_transformer_encoder_layer(src, params, compute_dtype=jnp.float32))
    assert jnp.allclose(out_f32, ref, atol=5e-2, rtol=5e-2), \
        "f32 kernel mismatch vs reference"

    # 3) exercise the split KV reduction (n_split=2) and pad+mask path:
    #    N=88 with block_n=16 -> padded to 96, 6 tiles, 2-way split, B=1.
    B2, N2 = 1, 88
    k_x2, k_p2 = jax.random.split(jax.random.PRNGKey(1))
    src2 = jax.random.normal(k_x2, (B2, N2, D), jnp.float32)
    params2 = make_params(k_p2, D, DFF)
    ref2 = reference_forward(src2, params2)
    out2 = jax.block_until_ready(
        linear_transformer_encoder_layer(src2, params2, block_n=16))
    assert out2.shape == (B2, N2, D)
    assert jnp.allclose(out2.astype(jnp.float32), ref2, atol=2e-1, rtol=2e-1), \
        "split/padded kernel mismatch vs reference"

    print("KERNEL_OK")
</pallas_src>

<mosaic_0001>
module attributes {stable_mosaic.version = 11 : i64} {
  func.func @kernel(%arg0: i32, %arg1: i32, %arg2: i32, %arg3: memref<1x32x128xbf16, #tpu.memory_space<vmem>>, %arg4: memref<128x256xbf16, #tpu.memory_space<vmem>>, %arg5: memref<1x256xf32, #tpu.memory_space<vmem>>, %arg6: memref<1x1x128x128xf32, #tpu.memory_space<vmem>>, %arg7: memref<1x1x1x128xf32, #tpu.memory_space<vmem>>) attributes {dimension_semantics = [#tpu.dimension_semantics<parallel>, #tpu.dimension_semantics<parallel>, #tpu.dimension_semantics<arbitrary>], iteration_bounds = array<i64: 1, 2, 1>, scalar_prefetch = 0 : i64, scratch_operands = 0 : i64, tpu.core_type = #tpu.core_type<tc>, window_params = [{transform_indices = @transform_0, window_bounds = array<i64: 1, 32, 128>}, {pipeline_mode = #tpu.pipeline_mode<synchronous>, transform_indices = @transform_1, window_bounds = array<i64: 128, 256>}, {pipeline_mode = #tpu.pipeline_mode<synchronous>, transform_indices = @transform_2, window_bounds = array<i64: 1, 256>}, {transform_indices = @transform_3, window_bounds = array<i64: 1, 1, 128, 128>}, {transform_indices = @transform_4, window_bounds = array<i64: 1, 1, 1, 128>}]} {
    %c0 = arith.constant 0 : index
    %c0_0 = arith.constant 0 : index
    %c0_1 = arith.constant 0 : index
    %0 = vector.load %arg3[%c0, %c0_0, %c0_1] : memref<1x32x128xbf16, #tpu.memory_space<vmem>>, vector<1x32x128xbf16>
    %1 = vector.shape_cast %0 : vector<1x32x128xbf16> to vector<32x128xbf16>
    %c0_2 = arith.constant 0 : index
    %c0_3 = arith.constant 0 : index
    %2 = vector.load %arg4[%c0_2, %c0_3] : memref<128x256xbf16, #tpu.memory_space<vmem>>, vector<128x256xbf16>
    %cst = arith.constant dense<0.000000e+00> : vector<32x256xf32>
    %3 = tpu.matmul %1, %2, %cst {dimension_numbers = #tpu.dot_dimension_numbers<[1], [0], [0], [1], [0, 0, 1, 1], [], []>} : vector<32x128xbf16>, vector<128x256xbf16>, vector<32x256xf32> -> vector<32x256xf32>
    %c0_4 = arith.constant 0 : index
    %c0_5 = arith.constant 0 : index
    %4 = vector.load %arg5[%c0_4, %c0_5] : memref<1x256xf32, #tpu.memory_space<vmem>>, vector<1x256xf32>
    %5 = vector.broadcast %4 : vector<1x256xf32> to vector<32x256xf32>
    %6 = arith.addf %3, %5 : vector<32x256xf32>
    %7 = vector.extract_strided_slice %6 {offsets = [0, 0], sizes = [32, 128], strides = [1, 1]} : vector<32x256xf32> to vector<32x128xf32>
    %cst_6 = arith.constant 0.000000e+00 : f32
    %8 = vector.broadcast %cst_6 : f32 to vector<32x128xf32>
    %9 = arith.maximumf %7, %8 : vector<32x128xf32>
    %cst_7 = arith.constant 9.99999997E-7 : f32
    %10 = vector.broadcast %cst_7 : f32 to vector<32x128xf32>
    %11 = arith.addf %9, %10 : vector<32x128xf32>
    %12 = vector.extract_strided_slice %6 {offsets = [0, 128], sizes = [32, 128], strides = [1, 1]} : vector<32x256xf32> to vector<32x128xf32>
    %13 = arith.truncf %11 : vector<32x128xf32> to vector<32x128xbf16>
    %14 = arith.truncf %12 : vector<32x128xf32> to vector<32x128xbf16>
    %cst_8 = arith.constant dense<0.000000e+00> : vector<128x128xf32>
    %15 = tpu.matmul %13, %14, %cst_8 {dimension_numbers = #tpu.dot_dimension_numbers<[0], [0], [1], [1], [0, 1, 1, 1], [], []>} : vector<32x128xbf16>, vector<32x128xbf16>, vector<128x128xf32> -> vector<128x128xf32>
    %cst_9 = arith.constant dense<0.000000e+00> : vector<128xf32>
    %16 = vector.multi_reduction <add>, %11, %cst_9 [0] : vector<32x128xf32> to vector<128xf32>
    %17 = vector.shape_cast %16 : vector<128xf32> to vector<1x128xf32>
    %c0_i32 = arith.constant 0 : i32
    %18 = arith.cmpi eq, %arg2, %c0_i32 : i32
    %19 = arith.extui %18 : i1 to i32
    %c0_i32_10 = arith.constant 0 : i32
    %20 = arith.cmpi ne, %19, %c0_i32_10 : i32
    scf.if %20 {
      %c0_13 = arith.constant 0 : index
      %c0_14 = arith.constant 0 : index
      %c0_15 = arith.constant 0 : index
      %c0_16 = arith.constant 0 : index
      %24 = vector.load %arg6[%c0_13, %c0_14, %c0_15, %c0_16] : memref<1x1x128x128xf32, #tpu.memory_space<vmem>>, vector<1x1x128x128xf32>
      %25 = vector.shape_cast %24 : vector<1x1x128x128xf32> to vector<128x128xf32>
      %26 = vector.shape_cast %15 : vector<128x128xf32> to vector<1x1x128x128xf32>
      tpu.vector_store %arg6[%c0_13, %c0_14, %c0_15, %c0_16], %26 {strides = array<i32>} : memref<1x1x128x128xf32, #tpu.memory_space<vmem>>, vector<1x1x128x128xf32>,
      %c0_17 = arith.constant 0 : index
      %c0_18 = arith.constant 0 : index
      %c0_19 = arith.constant 0 : index
      %c0_20 = arith.constant 0 : index
      %27 = vector.load %arg7[%c0_17, %c0_18, %c0_19, %c0_20] : memref<1x1x1x128xf32, #tpu.memory_space<vmem>>, vector<1x1x1x128xf32>
      %28 = vector.shape_cast %27 : vector<1x1x1x128xf32> to vector<1x128xf32>
      %29 = vector.shape_cast %17 : vector<1x128xf32> to vector<1x1x1x128xf32>
      tpu.vector_store %arg7[%c0_17, %c0_18, %c0_19, %c0_20], %29 {strides = array<i32>} : memref<1x1x1x128xf32, #tpu.memory_space<vmem>>, vector<1x1x1x128xf32>,
    } else {
    }
    %c0_i32_11 = arith.constant 0 : i32
    %21 = arith.cmpi ne, %arg2, %c0_i32_11 : i32
    %22 = arith.extui %21 : i1 to i32
    %c0_i32_12 = arith.constant 0 : i32
    %23 = arith.cmpi ne, %22, %c0_i32_12 : i32
    scf.if %23 {
      %c0_13 = arith.constant 0 : index
      %c0_14 = arith.constant 0 : index
      %c0_15 = arith.constant 0 : index
      %c0_16 = arith.constant 0 : index
      %24 = vector.load %arg6[%c0_13, %c0_14, %c0_15, %c0_16] : memref<1x1x128x128xf32, #tpu.memory_space<vmem>>, vector<1x1x128x128xf32>
      %25 = vector.shape_cast %24 : vector<1x1x128x128xf32> to vector<128x128xf32>
      %26 = arith.addf %25, %15 : vector<128x128xf32>
      %c0_17 = arith.constant 0 : index
      %c0_18 = arith.constant 0 : index
      %c0_19 = arith.constant 0 : index
      %c0_20 = arith.constant 0 : index
      %27 = vector.load %arg6[%c0_17, %c0_18, %c0_19, %c0_20] : memref<1x1x128x128xf32, #tpu.memory_space<vmem>>, vector<1x1x128x128xf32>
      %28 = vector.shape_cast %27 : vector<1x1x128x128xf32> to vector<128x128xf32>
      %29 = vector.shape_cast %26 : vector<128x128xf32> to vector<1x1x128x128xf32>
      tpu.vector_store %arg6[%c0_17, %c0_18, %c0_19, %c0_20], %29 {strides = array<i32>} : memref<1x1x128x128xf32, #tpu.memory_space<vmem>>, vector<1x1x128x128xf32>,
      %c0_21 = arith.constant 0 : index
      %c0_22 = arith.constant 0 : index
      %c0_23 = arith.constant 0 : index
      %c0_24 = arith.constant 0 : index
      %30 = vector.load %arg7[%c0_21, %c0_22, %c0_23, %c0_24] : memref<1x1x1x128xf32, #tpu.memory_space<vmem>>, vector<1x1x1x128xf32>
      %31 = vector.shape_cast %30 : vector<1x1x1x128xf32> to vector<1x128xf32>
      %32 = arith.addf %31, %17 : vector<1x128xf32>
      %c0_25 = arith.constant 0 : index
      %c0_26 = arith.constant 0 : index
      %c0_27 = arith.constant 0 : index
      %c0_28 = arith.constant 0 : index
      %33 = vector.load %arg7[%c0_25, %c0_26, %c0_27, %c0_28] : memref<1x1x1x128xf32, #tpu.memory_space<vmem>>, vector<1x1x1x128xf32>
      %34 = vector.shape_cast %33 : vector<1x1x1x128xf32> to vector<1x128xf32>
      %35 = vector.shape_cast %32 : vector<1x128xf32> to vector<1x1x1x128xf32>
      tpu.vector_store %arg7[%c0_25, %c0_26, %c0_27, %c0_28], %35 {strides = array<i32>} : memref<1x1x1x128xf32, #tpu.memory_space<vmem>>, vector<1x1x1x128xf32>,
    } else {
    }
    return
  }
  func.func @transform_0(%arg0: i32, %arg1: i32, %arg2: i32) -> (i32, i32, i32) {
    %c1_i32 = arith.constant 1 : i32
    %0 = arith.muli %arg0, %c1_i32 : i32
    %1 = arith.addi %0, %arg2 : i32
    %c0_i32 = arith.constant 0 : i32
    %c0_i32_0 = arith.constant 0 : i32
    return %arg1, %1, %c0_i32 : i32, i32, i32
  }
  func.func @transform_1(%arg0: i32, %arg1: i32, %arg2: i32) -> (i32, i32) {
    %c0_i32 = arith.constant 0 : i32
    %c0_i32_0 = arith.constant 0 : i32
    %c0_i32_1 = arith.constant 0 : i32
    return %c0_i32, %c0_i32_0 : i32, i32
  }
  func.func @transform_2(%arg0: i32, %arg1: i32, %arg2: i32) -> (i32, i32) {
    %c0_i32 = arith.constant 0 : i32
    %c0_i32_0 = arith.constant 0 : i32
    %c0_i32_1 = arith.constant 0 : i32
    return %c0_i32, %c0_i32_0 : i32, i32
  }
  func.func @transform_3(%arg0: i32, %arg1: i32, %arg2: i32) -> (i32, i32, i32, i32) {
    %c0_i32 = arith.constant 0 : i32
    %c0_i32_0 = arith.constant 0 : i32
    %c0_i32_1 = arith.constant 0 : i32
    return %arg0, %arg1, %c0_i32, %c0_i32_0 : i32, i32, i32, i32
  }
  func.func @transform_4(%arg0: i32, %arg1: i32, %arg2: i32) -> (i32, i32, i32, i32) {
    %c0_i32 = arith.constant 0 : i32
    %c0_i32_0 = arith.constant 0 : i32
    %c0_i32_1 = arith.constant 0 : i32
    return %arg0, %arg1, %c0_i32, %c0_i32_0 : i32, i32, i32, i32
  }
}

</mosaic_0001>

<llo_original>
// kernel: tpu_custom_call.1
$region0: #{tpu_custom_call.1}
  #allocation0 [shape = 'u32[]', space=smem, size = 0x4, offset = 0x4, fixed_abs, tag = 'smem constant byte address 0x4 - core index']
  #allocation1 [shape = 'u32[144,128]{1,0:T(1,128)}', space=vmem, size = 0x12000, scoped, tag = 'internal scratch']
  %s0 = inlined_call_operand.hbm [shape: bf16[2,32,128], index: 0, kind: input, shape index: {}]
  %s1 = inlined_call_operand.hbm [shape: bf16[128,256], index: 1, kind: input, shape index: {}]
  %s2 = inlined_call_operand.hbm [shape: f32[1,256], index: 2, kind: input, shape index: {}]
  %s3 = inlined_call_operand.hbm [shape: f32[1,2,128,128], index: 3, kind: output, shape index: {0}]
  %s4 = inlined_call_operand.hbm [shape: f32[1,2,1,128], index: 4, kind: output, shape index: {1}]
  %5 = xla_tuple %s3, %s4
  %s6 = sld [smem:[#allocation0]]
  $region73: #{tpu_custom_call.1} parent=0
    _
  %s8 = ssub.s32 1, %s6
  %s9 = scalar_select 0, %s8, %s6
  $region1: #{tpu_custom_call.1} parent=0
    #allocation2 [shape = 'u8[16384]{0}', space=vmem, size = 0x4000, scoped, tag = 'input window, operand 0']
    #allocation3 [shape = 's32[2]{0}', space=sflag, size = 0x8, scoped, tag = 'scoped memory for tpu_custom_call.1']
    #allocation4 [shape = 's32[2]{0}', space=sflag, size = 0x8, scoped, tag = 'scoped memory for tpu_custom_call.1']
    #allocation5 [shape = 'u8[65536]{0}', space=vmem, size = 0x10000, scoped, tag = 'input window, operand 1, single buffered']
    #allocation6 [shape = 's32[1]{0}', space=sflag, size = 0x4, scoped, tag = 'scoped memory for tpu_custom_call.1']
    #allocation7 [shape = 'u8[1024]{0}', space=vmem, size = 0x400, scoped, tag = 'input window, operand 2, single buffered']
    #allocation8 [shape = 'u8[131072]{0}', space=vmem, size = 0x20000, scoped, tag = 'output window, operand 0']
    #allocation9 [shape = 'u8[1024]{0}', space=vmem, size = 0x400, scoped, tag = 'output window, operand 1']
    #allocation10 [shape = 's32[2]{0}', space=sflag, size = 0x8, scoped, tag = 'scoped memory for tpu_custom_call.1']
    %10 = vsyncpa [#allocation3], 0
    %s11 = scalar_lea.sflag [#allocation3], 1
    %12 = vsyncpa %s11, 0
    %13 = vsyncpa [#allocation6], 0
    %14 = vsyncpa [#allocation4], 0
    %s15 = scalar_lea.sflag [#allocation4], 1
    %16 = vsyncpa %s15, 0
    %17 = vsyncpa [#allocation10], 0
    %s18 = scalar_lea.sflag [#allocation10], 1
    %19 = vsyncpa %s18, 0
    loop: start=0, step=1, limit=4
    $region2: #{tpu_custom_call.1} parent=1 // loop_pre_header
      _
    $region3: #{tpu_custom_call.1} parent=1 // loop_header
      %s21 = sphi 0, %s25
      %p22 = scmp.ge.s32.totalorder %s21, 4
      %s28 = sphi 0, %s47
      %s29 = sphi 0, %s43
      %s30 = sphi 0, %s39
      %s31 = sphi 0, %s28
      %s32 = sphi 0, %s29
      %s33 = sphi 0, %s30
      %s34 = sphi 0, %s31
      %s35 = sphi 0, %s32
      %s36 = sphi 0, %s33
      %s54 = sphi 0, %s56
      %s57 = sphi 0, %s54
      %s58 = sphi 0, %s57
      %s74 = sphi 0, %s58
      %s78 = sphi 0, %s78
      %s80 = sphi 0, %s78
      %s81 = sphi 0, %s80
      %s95 = sphi 0, %s81
      %s99 = sphi 0, %s99
      %s101 = sphi 0, %s99
      %s102 = sphi 0, %s101
      %s116 = sphi 0, %s102
      %s124 = sphi 0, %s126
      %s127 = sphi 0, %s124
      %s128 = sphi 0, %s127
      %s144 = sphi 0, %s128
      %s152 = sphi 0, %s154
      %s155 = sphi 0, %s152
      %s156 = sphi 0, %s155
      %s172 = sphi 0, %s156
    $region4: #{tpu_custom_call.1} parent=1 // loop_header_branch
      %24 = sbr.rel (%p22) target = $region8
    $region5: #{tpu_custom_call.1} parent=1 // loop_body
      %s26 = ssub.s32 %s21, 1
      %s27 = ssub.s32 %s21, 2
      %s37 = sadd.s32 1, %s30
      %p38 = scmp.ge.s32.totalorder %s37, 1
      %s39 = scalar_select %p38, 0, %s37
      %s40 = sadd.s32 1, %s29
      %s41 = scalar_select %p38, %s40, %s29
      %p42 = scmp.ge.s32.totalorder %s41, 2
      %s43 = scalar_select %p42, 0, %s41
      %s44 = sadd.s32 1, %s28
      %s45 = scalar_select %p42, %s44, %s28
      %p46 = scmp.ge.s32.totalorder %s45, 1
      %s47 = scalar_select %p46, 0, %s45
      %s48 = sadd.s32 %s28, %s30
      %s49 = sadd.s32 %s47, %s39
      %s50 = ssub.s32 %s29, %s43
      %s51 = ssub.s32 %s48, %s49
      %s52 = sor.u32 %s50, %s51
      %p53 = scmp.eq.s32.totalorder %s52, 0
      %s55 = sadd.s32 %s54, 1
      %s56 = scalar_select %p53, %s54, %s55
      %p59 = pneg %p53
      %p60 = scmp.eq.s32.totalorder %s21, 1
      %p61 = por %p59, %p60
      %p62 = scmp.ne.s32.totalorder %s54, %s57
      %p63 = scmp.eq.s32.totalorder %s21, 0
      %p64 = por %p62, %p63
      %p65 = scmp.ne.s32.totalorder %s54, %s57
      %p66 = scmp.eq.s32.totalorder %s26, 1
      %p67 = por %p65, %p66
      %p68 = scmp.ne.s32.totalorder %s57, %s58
      %p69 = scmp.eq.s32.totalorder %s26, 0
      %p70 = por %p68, %p69
      %p71 = scmp.ne.s32.totalorder %s57, %s58
      %p72 = scmp.eq.s32.totalorder %s27, 1
      %p73 = por %p71, %p72
      %p75 = scmp.ne.s32.totalorder %s58, %s74
      %p76 = scmp.eq.s32.totalorder %s27, 0
      %p77 = por %p75, %p76
      %s79 = sadd.s32 %s78, 1
      %p82 = scmp.eq.s32.totalorder %s21, 1
      %p83 = scmp.ne.s32.totalorder %s78, %s80
      %p84 = scmp.eq.s32.totalorder %s21, 0
      %p85 = por %p83, %p84
      %p86 = scmp.ne.s32.totalorder %s78, %s80
      %p87 = scmp.eq.s32.totalorder %s26, 1
      %p88 = por %p86, %p87
      %p89 = scmp.ne.s32.totalorder %s80, %s81
      %p90 = scmp.eq.s32.totalorder %s26, 0
      %p91 = por %p89, %p90
      %p92 = scmp.ne.s32.totalorder %s80, %s81
      %p93 = scmp.eq.s32.totalorder %s27, 1
      %p94 = por %p92, %p93
      %p96 = scmp.ne.s32.totalorder %s81, %s95
      %p97 = scmp.eq.s32.totalorder %s27, 0
      %p98 = por %p96, %p97
      %s100 = sadd.s32 %s99, 1
      %p103 = scmp.eq.s32.totalorder %s21, 1
      %p104 = scmp.ne.s32.totalorder %s99, %s101
      %p105 = scmp.eq.s32.totalorder %s21, 0
      %p106 = por %p104, %p105
      %p107 = scmp.ne.s32.totalorder %s99, %s101
      %p108 = scmp.eq.s32.totalorder %s26, 1
      %p109 = por %p107, %p108
      %p110 = scmp.ne.s32.totalorder %s101, %s102
      %p111 = scmp.eq.s32.totalorder %s26, 0
      %p112 = por %p110, %p111
      %p113 = scmp.ne.s32.totalorder %s101, %s102
      %p114 = scmp.eq.s32.totalorder %s27, 1
      %p115 = por %p113, %p114
      %p117 = scmp.ne.s32.totalorder %s102, %s116
      %p118 = scmp.eq.s32.totalorder %s27, 0
      %p119 = por %p117, %p118
      %s120 = ssub.s32 %s28, %s47
      %s121 = ssub.s32 %s29, %s43
      %s122 = sor.u32 %s120, %s121
      %p123 = scmp.eq.s32.totalorder %s122, 0
      %s125 = sadd.s32 %s124, 1
      %s126 = scalar_select %p123, %s124, %s125
      %p129 = pneg %p123
      %p130 = scmp.eq.s32.totalorder %s21, 1
      %p131 = por %p129, %p130
      %p132 = scmp.ne.s32.totalorder %s124, %s127
      %p133 = scmp.eq.s32.totalorder %s21, 0
      %p134 = por %p132, %p133
      %p135 = scmp.ne.s32.totalorder %s124, %s127
      %p136 = scmp.eq.s32.totalorder %s26, 1
      %p137 = por %p135, %p136
      %p138 = scmp.ne.s32.totalorder %s127, %s128
      %p139 = scmp.eq.s32.totalorder %s26, 0
      %p140 = por %p138, %p139
      %p141 = scmp.ne.s32.totalorder %s127, %s128
      %p142 = scmp.eq.s32.totalorder %s27, 1
      %p143 = por %p141, %p142
      %p145 = scmp.ne.s32.totalorder %s128, %s144
      %p146 = scmp.eq.s32.totalorder %s27, 0
      %p147 = por %p145, %p146
      %s148 = ssub.s32 %s28, %s47
      %s149 = ssub.s32 %s29, %s43
      %s150 = sor.u32 %s148, %s149
      %p151 = scmp.eq.s32.totalorder %s150, 0
      %s153 = sadd.s32 %s152, 1
      %s154 = scalar_select %p151, %s152, %s153
      %p157 = pneg %p151
      %p158 = scmp.eq.s32.totalorder %s21, 1
      %p159 = por %p157, %p158
      %p160 = scmp.ne.s32.totalorder %s152, %s155
      %p161 = scmp.eq.s32.totalorder %s21, 0
      %p162 = por %p160, %p161
      %p163 = scmp.ne.s32.totalorder %s152, %s155
      %p164 = scmp.eq.s32.totalorder %s26, 1
      %p165 = por %p163, %p164
      %p166 = scmp.ne.s32.totalorder %s155, %s156
      %p167 = scmp.eq.s32.totalorder %s26, 0
      %p168 = por %p166, %p167
      %p169 = scmp.ne.s32.totalorder %s155, %s156
      %p170 = scmp.eq.s32.totalorder %s27, 1
      %p171 = por %p169, %p170
      %p173 = scmp.ne.s32.totalorder %s156, %s172
      %p174 = scmp.eq.s32.totalorder %s27, 0
      %p175 = por %p173, %p174
      %p176 = scmp.le.s32.totalorder 1, %s21
      %p177 = scmp.lt.s32.totalorder %s21, 3
      %p178 = pnand %p176, %p177
      %p179 = pneg %p178
      // Predicated region
      $region9: #{tpu_custom_call.1} parent=5 // pred_check
        _
      $region10: #{tpu_custom_call.1} parent=5 // pred_check_branch
        %181 = sbr.rel (%p178) target = $region12
      $region11: #{tpu_custom_call.1} parent=5 // pred_region
        %s182 = ssub.s32 %s21, 1
        // Predicated region
        $region13: #{tpu_custom_call.1} parent=11 // pred_check
          %p183 = pneg %p91
        $region14: #{tpu_custom_call.1} parent=11 // pred_check_branch
          %185 = sbr.rel (%p183) target = $region16
        $region15: #{tpu_custom_call.1} parent=11 // pred_region
          %s187 = ssub.s32 2048, 2048
          %188 = vsyncadd [#allocation6], %s187
          %s189 = sshll.u32 [#allocation5], 4
          %s190 = int_to_ptr.vmem [resolvable:$true] %s189
          %195 = dma.hbm_to_vmem [thread:$0]  %s1, 2048, %s190, [#allocation6], 128, 128, 8
        $region16: #{tpu_custom_call.1} parent=11 // pred_fallthru
          _
        // Predicated region
        $region17: #{tpu_custom_call.1} parent=11 // pred_check
          %p196 = pneg %p112
        $region18: #{tpu_custom_call.1} parent=11 // pred_check_branch
          %198 = sbr.rel (%p196) target = $region20
        $region19: #{tpu_custom_call.1} parent=11 // pred_region
          %s200 = ssub.s32 32, 32
          %201 = vsyncadd [#allocation6], %s200
          %s203 = sshll.u32 [#allocation7], 4
          %s204 = int_to_ptr.vmem [resolvable:$true] %s203
          %206 = dma.hbm_to_vmem [thread:$0]  %s2, 32, %s204, [#allocation6]
        $region20: #{tpu_custom_call.1} parent=11 // pred_fallthru
          _
      $region12: #{tpu_custom_call.1} parent=5 // pred_fallthru
        _
      %p207 = scmp.lt.s32.totalorder %s21, 2
      // Predicated region
      $region21: #{tpu_custom_call.1} parent=5 // pred_check
        %p208 = pneg %p207
      $region22: #{tpu_custom_call.1} parent=5 // pred_check_branch
        %210 = sbr.rel (%p208) target = $region24
      $region23: #{tpu_custom_call.1} parent=5 // pred_region
        // Predicated region
        $region25: #{tpu_custom_call.1} parent=23 // pred_check
          %p211 = pneg %p64
        $region26: #{tpu_custom_call.1} parent=23 // pred_check_branch
          %213 = sbr.rel (%p211) target = $region28
        $region27: #{tpu_custom_call.1} parent=23 // pred_region
          %s214 = sand.u32 %s54, 1
          %s215 = scalar_lea.sflag [#allocation3], %s214
          %s216 = sand.u32 %s54, 1
          %s217 = smul.addr %s216, 16
          %s218 = scalar_lea.vmem [#allocation2], %s217
          %s219 = sadd.s32 %s28, %s30
          %s220 = smul.u32 4, %s219
          %s222 = ssub.s32 256, 256
          %223 = vsyncadd %s215, %s222
          %s224 = smul.addr %s29, 4
          %s225 = sadd.s32 %s220, %s224
          %s226 = smul.addr %s225, 64
          %s227 = scalar_lea.hbm %s0, %s226
          %s228 = sshll.u32 %s218, 4
          %s229 = int_to_ptr.vmem [resolvable:$true] %s228
          %234 = dma.hbm_to_vmem [thread:$0]  %s227, 256, %s229, %s215, 64, 64, 4
        $region28: #{tpu_custom_call.1} parent=23 // pred_fallthru
          _
      $region24: #{tpu_custom_call.1} parent=5 // pred_fallthru
        _
      %p235 = scmp.le.s32.totalorder 1, %s21
      %p236 = scmp.lt.s32.totalorder %s21, 3
      %p237 = pnand %p235, %p236
      %p238 = pneg %p237
      // Predicated region
      $region29: #{tpu_custom_call.1} parent=5 // pred_check
        _
      $region30: #{tpu_custom_call.1} parent=5 // pred_check_branch
        %240 = sbr.rel (%p237) target = $region32
      $region31: #{tpu_custom_call.1} parent=5 // pred_region
        %s241 = ssub.s32 %s21, 1
        %s242 = sand.u32 %s57, 1
        %s243 = scalar_lea.sflag [#allocation3], %s242
        %s244 = sand.u32 %s57, 1
        %s245 = smul.addr %s244, 16
        %s246 = scalar_lea.vmem [#allocation2], %s245
        // Predicated region
        $region33: #{tpu_custom_call.1} parent=31 // pred_check
          %p247 = pneg %p70
        $region34: #{tpu_custom_call.1} parent=31 // pred_check_branch
          %249 = sbr.rel (%p247) target = $region36
        $region35: #{tpu_custom_call.1} parent=31 // pred_region
          %250 = dma.done %s243, 256
        $region36: #{tpu_custom_call.1} parent=31 // pred_fallthru
          _
        // Predicated region
        $region37: #{tpu_custom_call.1} parent=31 // pred_check
          %p251 = pneg %p91
        $region38: #{tpu_custom_call.1} parent=31 // pred_check_branch
          %253 = sbr.rel (%p251) target = $region40
        $region39: #{tpu_custom_call.1} parent=31 // pred_region
          %254 = dma.done [#allocation6], 2048
        $region40: #{tpu_custom_call.1} parent=31 // pred_fallthru
          _
        // Predicated region
        $region41: #{tpu_custom_call.1} parent=31 // pred_check
          %p255 = pneg %p112
        $region42: #{tpu_custom_call.1} parent=31 // pred_check_branch
          %257 = sbr.rel (%p255) target = $region44
        $region43: #{tpu_custom_call.1} parent=31 // pred_region
          %258 = dma.done [#allocation6], 32
        $region44: #{tpu_custom_call.1} parent=31 // pred_fallthru
          _
        %s259 = sand.u32 %s57, 1
        %s260 = scalar_lea.sflag [#allocation3], %s259
        %s261 = sand.u32 %s57, 1
        %s262 = smul.addr %s261, 16
        %s263 = scalar_lea.vmem [#allocation2], %s262
        %p264 = pneg %p70
        %p265 = pneg %p67
        %p266 = pneg %p91
        %p267 = pneg %p88
        %p268 = pneg %p112
        %p269 = pneg %p109
        %p270 = pneg %p140
        %p271 = pneg %p137
        %s272 = sand.u32 %s127, 1
        %s273 = scalar_lea.sflag [#allocation4], %s272
        %s274 = sand.u32 %s127, 1
        %s275 = smul.addr %s274, 128
        %s276 = scalar_lea.vmem [#allocation8], %s275
        %p277 = pneg %p168
        %p278 = pneg %p165
        %s279 = sand.u32 %s155, 1
        %s280 = scalar_lea.sflag [#allocation10], %s279
        %s281 = sand.u32 %s155, 1
        %s282 = scalar_lea.vmem [#allocation9], %s281
        %s283 = sadd.s32 %s31, %s33
        %s284 = smul.u32 4, %s283
        %v286 = vld [vmem:[%s246] sm:$0xf]
        %v287 = vld [vmem:[%s246 + $0x4] sm:$0xf]
        %v288 = vld [vmem:[%s246 + $0x8] sm:$0xf]
        %v289 = vld [vmem:[%s246 + $0xc] sm:$0xf]
        %v290 = vld [vmem:[#allocation5] sm:$0xff]
        %v291 = vld [vmem:[#allocation5 + $0x8] sm:$0xff]
        %v292 = vld [vmem:[#allocation5 + $0x10] sm:$0xff]
        %v293 = vld [vmem:[#allocation5 + $0x18] sm:$0xff]
        %v294 = vld [vmem:[#allocation5 + $0x20] sm:$0xff]
        %v295 = vld [vmem:[#allocation5 + $0x28] sm:$0xff]
        %v296 = vld [vmem:[#allocation5 + $0x30] sm:$0xff]
        %v297 = vld [vmem:[#allocation5 + $0x38] sm:$0xff]
        %v298 = vld [vmem:[#allocation5 + $0x40] sm:$0xff]
        %v299 = vld [vmem:[#allocation5 + $0x48] sm:$0xff]
        %v300 = vld [vmem:[#allocation5 + $0x50] sm:$0xff]
        %v301 = vld [vmem:[#allocation5 + $0x58] sm:$0xff]
        %v302 = vld [vmem:[#allocation5 + $0x60] sm:$0xff]
        %v303 = vld [vmem:[#allocation5 + $0x68] sm:$0xff]
        %v304 = vld [vmem:[#allocation5 + $0x70] sm:$0xff]
        %v305 = vld [vmem:[#allocation5 + $0x78] sm:$0xff]
        %v306 = vld [vmem:[#allocation7] sm:$0x3]
        %v308 = vlaneseq
        %v309 = vshrl.u32 %v308, 7
        %v310 = vsub.s32 0, %v309
        %v311 = vrot.slane %v306, %v310
        %v312 = vlaneseq
        %v313 = vshrl.u32 %v312, 7
        %v314 = vsub.s32 1, %v313
        %v315 = vrot.slane %v306, %v314
        %v322 = vunpack.c.l.b16 %v286
        %v323 = vunpack.c.l.b16 %v287
        %v324 = vunpack.c.l.b16 %v288
        %v325 = vunpack.c.l.b16 %v289
        %v326 = vpack.c.b16 %v323, %v322
        %v327 = vpack.c.b16 %v325, %v324
        %v346 = vunpack.c.l.b16 %v290
        %v347 = vunpack.c.h.b16 %v290
        %v348 = vunpack.c.l.b16 %v291
        %v349 = vunpack.c.h.b16 %v291
        %v350 = vunpack.c.l.b16 %v292
        %v351 = vunpack.c.h.b16 %v292
        %v352 = vunpack.c.l.b16 %v293
        %v353 = vunpack.c.h.b16 %v293
        %v354 = vunpack.c.l.b16 %v294
        %v355 = vunpack.c.h.b16 %v294
        %v356 = vunpack.c.l.b16 %v295
        %v357 = vunpack.c.h.b16 %v295
        %v358 = vunpack.c.l.b16 %v296
        %v359 = vunpack.c.h.b16 %v296
        %v360 = vunpack.c.l.b16 %v297
        %v361 = vunpack.c.h.b16 %v297
        %v362 = vunpack.c.l.b16 %v298
        %v363 = vunpack.c.h.b16 %v298
        %v364 = vunpack.c.l.b16 %v299
        %v365 = vunpack.c.h.b16 %v299
        %v366 = vunpack.c.l.b16 %v300
        %v367 = vunpack.c.h.b16 %v300
        %v368 = vunpack.c.l.b16 %v301
        %v369 = vunpack.c.h.b16 %v301
        %v370 = vunpack.c.l.b16 %v302
        %v371 = vunpack.c.h.b16 %v302
        %v372 = vunpack.c.l.b16 %v303
        %v373 = vunpack.c.h.b16 %v303
        %v374 = vunpack.c.l.b16 %v304
        %v375 = vunpack.c.h.b16 %v304
        %v376 = vunpack.c.l.b16 %v305
        %v377 = vunpack.c.h.b16 %v305
        %v378 = vpack.c.b16 %v348, %v346
        %v379 = vpack.c.b16 %v349, %v347
        %v380 = vpack.c.b16 %v352, %v350
        %v381 = vpack.c.b16 %v353, %v351
        %v382 = vpack.c.b16 %v356, %v354
        %v383 = vpack.c.b16 %v357, %v355
        %v384 = vpack.c.b16 %v360, %v358
        %v385 = vpack.c.b16 %v361, %v359
        %v386 = vpack.c.b16 %v364, %v362
        %v387 = vpack.c.b16 %v365, %v363
        %v388 = vpack.c.b16 %v368, %v366
        %v389 = vpack.c.b16 %v369, %v367
        %v390 = vpack.c.b16 %v372, %v370
        %v391 = vpack.c.b16 %v373, %v371
        %v392 = vpack.c.b16 %v376, %v374
        %v393 = vpack.c.b16 %v377, %v375
        %410 = vmatprep.subr.bf16.mxu0 %v379
        %411 = vmatpush1.bf16.msra.mxu0 %v378
        %412 = vmatprep.subr.bf16.mxu0 %v381
        %413 = vmatpush1.bf16.msra.mxu0 %v380
        %414 = vmatprep.subr.bf16.mxu0 %v383
        %415 = vmatpush1.bf16.msra.mxu0 %v382
        %416 = vmatprep.subr.bf16.mxu0 %v385
        %417 = vmatpush1.bf16.msra.mxu0 %v384
        %418 = vmatprep.subr.bf16.mxu0 %v387
        %419 = vmatpush1.bf16.msra.mxu0 %v386
        %420 = vmatprep.subr.bf16.mxu0 %v389
        %421 = vmatpush1.bf16.msra.mxu0 %v388
        %422 = vmatprep.subr.bf16.mxu0 %v391
        %423 = vmatpush1.bf16.msra.mxu0 %v390
        %424 = vmatprep.subr.bf16.mxu0 %v393
        %425 = vmatpush1.bf16.msra.mxu0 %v392
        %426 = vmatprep.subr.bf16.mxu0 0
        %427 = vmatpush1.bf16.msra.mxu0 0
        %428 = vmatprep.subr.bf16.mxu0 0
        %429 = vmatpush1.bf16.msra.mxu0 0
        %430 = vmatprep.subr.bf16.mxu0 0
        %431 = vmatpush1.bf16.msra.mxu0 0
        %432 = vmatprep.subr.bf16.mxu0 0
        %433 = vmatpush1.bf16.msra.mxu0 0
        %434 = vmatprep.subr.bf16.mxu0 0
        %435 = vmatpush1.bf16.msra.mxu0 0
        %436 = vmatprep.subr.bf16.mxu0 0
        %437 = vmatpush1.bf16.msra.mxu0 0
        %438 = vmatprep.subr.bf16.mxu0 0
        %439 = vmatpush1.bf16.msra.mxu0 0
        %440 = vmatprep.subr.bf16.mxu0 0
        %441 = vmatpush1.bf16.msra.mxu0 0
        %442 = vmatprep.mubr.bf16.mxu0 0
        %443 = vmatmul.mubr.bf16.gmra.mrb[0].mxu0 %v326
        %v444 = vpop.f32.mrb[0].mxu0
        %v445 = vadd.f32 %v311, %v444
        %v446 = vpop.f32.mrb[0].mxu0
        %v447 = vadd.f32 %v315, %v446
        %v448 = vpop.f32.mrb[0].mxu0
        %v449 = vadd.f32 %v311, %v448
        %v450 = vpop.f32.mrb[0].mxu0
        %v451 = vadd.f32 %v315, %v450
        %452 = vmatprep.mubr.bf16.mxu0 0
        %453 = vmatmul.mubr.bf16.gmra.mrb[0].mxu0 %v327
        %v454 = vpop.f32.mrb[0].mxu0
        %v455 = vadd.f32 %v311, %v454
        %v456 = vpop.f32.mrb[0].mxu0
        %v457 = vadd.f32 %v315, %v456
        %v458 = vpop.f32.mrb[0].mxu0
        %v459 = vadd.f32 %v311, %v458
        %v460 = vpop.f32.mrb[0].mxu0
        %v461 = vadd.f32 %v315, %v460
        %462 = vdwg.mxu0
        %v463 = vmax.f32 %v445, 0.0
        %v464 = vmax.f32 %v449, 0.0
        %v465 = vmax.f32 %v455, 0.0
        %v466 = vmax.f32 %v459, 0.0
        %v467 = vadd.f32 %v463, 1e-06
        %v468 = vadd.f32 %v464, 1e-06
        %v469 = vadd.f32 %v465, 1e-06
        %v470 = vadd.f32 %v466, 1e-06
        %v471 = vpack.c.bf16 %v468, %v467
        %v472 = vpack.c.bf16 %v470, %v469
        %v473 = vpack.c.bf16 %v451, %v447
        %v474 = vpack.c.bf16 %v461, %v457
        %475 = vxpose.xlu0.c.b16.start [1/8] %v471, 128
        %476 = vxpose.xlu0.c.b16.cont [2/8] %v472, 128
        %477 = vxpose.xlu0.c.b16.cont [3/8] 0, 128
        %478 = vxpose.xlu0.c.b16.cont [4/8] 0, 128
        %479 = vxpose.xlu0.c.b16.cont [5/8] 0, 128
        %480 = vxpose.xlu0.c.b16.cont [6/8] 0, 128
        %481 = vxpose.xlu0.c.b16.cont [7/8] 0, 128
        %482 = vxpose.xlu0.c.b16.end [8/8] 0, 128
        %v483 = vpop.trf.xlu0
        %v484 = vpop.trf.xlu0
        %v485 = vpop.trf.xlu0
        %v486 = vpop.trf.xlu0
        %v487 = vpop.trf.xlu0
        %v488 = vpop.trf.xlu0
        %v489 = vpop.trf.xlu0
        %v490 = vpop.trf.xlu0
        %vm491 = vcmask 261120
        %v493 = vsel %vm491, %v483, 0
        %v496 = vsel %vm491, %v484, 0
        %v499 = vsel %vm491, %v485, 0
        %v502 = vsel %vm491, %v486, 0
        %v505 = vsel %vm491, %v487, 0
        %v508 = vsel %vm491, %v488, 0
        %v511 = vsel %vm491, %v489, 0
        %v514 = vsel %vm491, %v490, 0
        %516 = vmatprep.subr.bf16.mxu0 0
        %517 = vmatpush1.bf16.msra.mxu0 %v473
        %518 = vmatprep.subr.bf16.mxu0 0
        %519 = vmatpush1.bf16.msra.mxu0 %v474
        %520 = vmatprep.subr.bf16.mxu0 0
        %521 = vmatpush1.bf16.msra.mxu0 0
        %522 = vmatprep.subr.bf16.mxu0 0
        %523 = vmatpush1.bf16.msra.mxu0 0
        %524 = vmatprep.subr.bf16.mxu0 0
        %525 = vmatpush1.bf16.msra.mxu0 0
        %526 = vmatprep.subr.bf16.mxu0 0
        %527 = vmatpush1.bf16.msra.mxu0 0
        %528 = vmatprep.subr.bf16.mxu0 0
        %529 = vmatpush1.bf16.msra.mxu0 0
        %530 = vmatprep.subr.bf16.mxu0 0
        %531 = vmatpush1.bf16.msra.mxu0 0
        %532 = vmatprep.subr.bf16.mxu0 0
        %533 = vmatpush1.bf16.msra.mxu0 0
        %534 = vmatprep.subr.bf16.mxu0 0
        %535 = vmatpush1.bf16.msra.mxu0 0
        %536 = vmatprep.subr.bf16.mxu0 0
        %537 = vmatpush1.bf16.msra.mxu0 0
        %538 = vmatprep.subr.bf16.mxu0 0
        %539 = vmatpush1.bf16.msra.mxu0 0
        %540 = vmatprep.subr.bf16.mxu0 0
        %541 = vmatpush1.bf16.msra.mxu0 0
        %542 = vmatprep.subr.bf16.mxu0 0
        %543 = vmatpush1.bf16.msra.mxu0 0
        %544 = vmatprep.subr.bf16.mxu0 0
        %545 = vmatpush1.bf16.msra.mxu0 0
        %546 = vmatprep.subr.bf16.mxu0 0
        %547 = vmatpush1.bf16.msra.mxu0 0
        %548 = vmatprep.mubr.bf16.mxu0 0
        %549 = vmatmul.mubr.bf16.gmra.mrb[0].mxu0 %v493
        %v550 = vpop.f32.mrb[0].mxu0
        %v551 = vadd.f32 0.0, %v550
        %v552 = vpop.f32.mrb[0].mxu0
        %v553 = vpop.f32.mrb[0].mxu0
        %v554 = vadd.f32 0.0, %v553
        %v555 = vpop.f32.mrb[0].mxu0
        %556 = vmatprep.mubr.bf16.mxu0 0
        %557 = vmatmul.mubr.bf16.gmra.mrb[0].mxu0 %v496
        %v558 = vpop.f32.mrb[0].mxu0
        %v559 = vadd.f32 0.0, %v558
        %v560 = vpop.f32.mrb[0].mxu0
        %v561 = vpop.f32.mrb[0].mxu0
        %v562 = vadd.f32 0.0, %v561
        %v563 = vpop.f32.mrb[0].mxu0
        %564 = vmatprep.mubr.bf16.mxu0 0
        %565 = vmatmul.mubr.bf16.gmra.mrb[0].mxu0 %v499
        %v566 = vpop.f32.mrb[0].mxu0
        %v567 = vadd.f32 0.0, %v566
        %v568 = vpop.f32.mrb[0].mxu0
        %v569 = vpop.f32.mrb[0].mxu0
        %v570 = vadd.f32 0.0, %v569
        %v571 = vpop.f32.mrb[0].mxu0
        %572 = vmatprep.mubr.bf16.mxu0 0
        %573 = vmatmul.mubr.bf16.gmra.mrb[0].mxu0 %v502
        %v574 = vpop.f32.mrb[0].mxu0
        %v575 = vadd.f32 0.0, %v574
        %v576 = vpop.f32.mrb[0].mxu0
        %v577 = vpop.f32.mrb[0].mxu0
        %v578 = vadd.f32 0.0, %v577
        %v579 = vpop.f32.mrb[0].mxu0
        %580 = vmatprep.mubr.bf16.mxu0 0
        %581 = vmatmul.mubr.bf16.gmra.mrb[0].mxu0 %v505
        %v582 = vpop.f32.mrb[0].mxu0
        %v583 = vadd.f32 0.0, %v582
        %v584 = vpop.f32.mrb[0].mxu0
        %v585 = vpop.f32.mrb[0].mxu0
        %v586 = vadd.f32 0.0, %v585
        %v587 = vpop.f32.mrb[0].mxu0
        %588 = vmatprep.mubr.bf16.mxu0 0
        %589 = vmatmul.mubr.bf16.gmra.mrb[0].mxu0 %v508
        %v590 = vpop.f32.mrb[0].mxu0
        %v591 = vadd.f32 0.0, %v590
        %v592 = vpop.f32.mrb[0].mxu0
        %v593 = vpop.f32.mrb[0].mxu0
        %v594 = vadd.f32 0.0, %v593
        %v595 = vpop.f32.mrb[0].mxu0
        %596 = vmatprep.mubr.bf16.mxu0 0
        %597 = vmatmul.mubr.bf16.gmra.mrb[0].mxu0 %v511
        %v598 = vpop.f32.mrb[0].mxu0
        %v599 = vadd.f32 0.0, %v598
        %v600 = vpop.f32.mrb[0].mxu0
        %v601 = vpop.f32.mrb[0].mxu0
        %v602 = vadd.f32 0.0, %v601
        %v603 = vpop.f32.mrb[0].mxu0
        %604 = vmatprep.mubr.bf16.mxu0 0
        %605 = vmatmul.mubr.bf16.gmra.mrb[0].mxu0 %v514
        %v606 = vpop.f32.mrb[0].mxu0
        %v607 = vadd.f32 0.0, %v606
        %v608 = vpop.f32.mrb[0].mxu0
        %v609 = vpop.f32.mrb[0].mxu0
        %v610 = vadd.f32 0.0, %v609
        %v611 = vpop.f32.mrb[0].mxu0
        %612 = vdwg.mxu0
        %v613 = vadd.f32 %v467, %v468
        %v614 = vadd.f32 %v613, %v469
        %v615 = vadd.f32 %v614, %v470
        %v616 = vrot.slane %v615, 4
        %v617 = vadd.f32 %v615, %v616
        %v618 = vrot.slane %v617, 2
        %v619 = vadd.f32 %v617, %v618
        %v620 = vrot.slane %v619, 1
        %v621 = vadd.f32 %v619, %v620
        %p622 = scmp.eq.s32.totalorder %s33, 0
        // Predicated region
        $region45: #{tpu_custom_call.1} parent=31 // pred_check
          %p623 = pneg %p622
        $region46: #{tpu_custom_call.1} parent=31 // pred_check_branch
          %625 = sbr.rel (%p623) target = $region48
        $region47: #{tpu_custom_call.1} parent=31 // pred_region
          %626 = vst [vmem:[%s276] sm:$0xff] %v551
          %627 = vst [vmem:[%s276 + $0x8] sm:$0xff] %v554
          %628 = vst [vmem:[%s276 + $0x10] sm:$0xff] %v559
          %629 = vst [vmem:[%s276 + $0x18] sm:$0xff] %v562
          %630 = vst [vmem:[%s276 + $0x20] sm:$0xff] %v567
          %631 = vst [vmem:[%s276 + $0x28] sm:$0xff] %v570
          %632 = vst [vmem:[%s276 + $0x30] sm:$0xff] %v575
          %633 = vst [vmem:[%s276 + $0x38] sm:$0xff] %v578
          %634 = vst [vmem:[%s276 + $0x40] sm:$0xff] %v583
          %635 = vst [vmem:[%s276 + $0x48] sm:$0xff] %v586
          %636 = vst [vmem:[%s276 + $0x50] sm:$0xff] %v591
          %637 = vst [vmem:[%s276 + $0x58] sm:$0xff] %v594
          %638 = vst [vmem:[%s276 + $0x60] sm:$0xff] %v599
          %639 = vst [vmem:[%s276 + $0x68] sm:$0xff] %v602
          %640 = vst [vmem:[%s276 + $0x70] sm:$0xff] %v607
          %641 = vst [vmem:[%s276 + $0x78] sm:$0xff] %v610
          %642 = vst [vmem:[%s282] sm:$0x1] %v621
        $region48: #{tpu_custom_call.1} parent=31 // pred_fallthru
          _
        %p643 = scmp.ne.s32.totalorder %s33, 0
        // Predicated region
        $region49: #{tpu_custom_call.1} parent=31 // pred_check
          %p644 = pneg %p643
        $region50: #{tpu_custom_call.1} parent=31 // pred_check_branch
          %646 = sbr.rel (%p644) target = $region52
        $region51: #{tpu_custom_call.1} parent=31 // pred_region
          %v647 = vld [vmem:[%s276] sm:$0xff]
          %v648 = vld [vmem:[%s276 + $0x8] sm:$0xff]
          %v649 = vld [vmem:[%s276 + $0x10] sm:$0xff]
          %v650 = vld [vmem:[%s276 + $0x18] sm:$0xff]
          %v651 = vld [vmem:[%s276 + $0x20] sm:$0xff]
          %v652 = vld [vmem:[%s276 + $0x28] sm:$0xff]
          %v653 = vld [vmem:[%s276 + $0x30] sm:$0xff]
          %v654 = vld [vmem:[%s276 + $0x38] sm:$0xff]
          %v655 = vld [vmem:[%s276 + $0x40] sm:$0xff]
          %v656 = vld [vmem:[%s276 + $0x48] sm:$0xff]
          %v657 = vld [vmem:[%s276 + $0x50] sm:$0xff]
          %v658 = vld [vmem:[%s276 + $0x58] sm:$0xff]
          %v659 = vld [vmem:[%s276 + $0x60] sm:$0xff]
          %v660 = vld [vmem:[%s276 + $0x68] sm:$0xff]
          %v661 = vld [vmem:[%s276 + $0x70] sm:$0xff]
          %v662 = vld [vmem:[%s276 + $0x78] sm:$0xff]
          %v663 = vadd.f32 %v647, %v551
          %v664 = vadd.f32 %v648, %v554
          %v665 = vadd.f32 %v649, %v559
          %v666 = vadd.f32 %v650, %v562
          %v667 = vadd.f32 %v651, %v567
          %v668 = vadd.f32 %v652, %v570
          %v669 = vadd.f32 %v653, %v575
          %v670 = vadd.f32 %v654, %v578
          %v671 = vadd.f32 %v655, %v583
          %v672 = vadd.f32 %v656, %v586
          %v673 = vadd.f32 %v657, %v591
          %v674 = vadd.f32 %v658, %v594
          %v675 = vadd.f32 %v659, %v599
          %v676 = vadd.f32 %v660, %v602
          %v677 = vadd.f32 %v661, %v607
          %v678 = vadd.f32 %v662, %v610
          %679 = vst [vmem:[%s276] sm:$0xff] %v663
          %680 = vst [vmem:[%s276 + $0x8] sm:$0xff] %v664
          %681 = vst [vmem:[%s276 + $0x10] sm:$0xff] %v665
          %682 = vst [vmem:[%s276 + $0x18] sm:$0xff] %v666
          %683 = vst [vmem:[%s276 + $0x20] sm:$0xff] %v667
          %684 = vst [vmem:[%s276 + $0x28] sm:$0xff] %v668
          %685 = vst [vmem:[%s276 + $0x30] sm:$0xff] %v669
          %686 = vst [vmem:[%s276 + $0x38] sm:$0xff] %v670
          %687 = vst [vmem:[%s276 + $0x40] sm:$0xff] %v671
          %688 = vst [vmem:[%s276 + $0x48] sm:$0xff] %v672
          %689 = vst [vmem:[%s276 + $0x50] sm:$0xff] %v673
          %690 = vst [vmem:[%s276 + $0x58] sm:$0xff] %v674
          %691 = vst [vmem:[%s276 + $0x60] sm:$0xff] %v675
          %692 = vst [vmem:[%s276 + $0x68] sm:$0xff] %v676
          %693 = vst [vmem:[%s276 + $0x70] sm:$0xff] %v677
          %694 = vst [vmem:[%s276 + $0x78] sm:$0xff] %v678
          %v695 = vld [vmem:[%s282] sm:$0x1]
          %v696 = vadd.f32 %v695, %v621
          %697 = vst [vmem:[%s282] sm:$0x1] %v696
        $region52: #{tpu_custom_call.1} parent=31 // pred_fallthru
          _
        %s698 = sand.u32 %s127, 1
        %s699 = scalar_lea.sflag [#allocation4], %s698
        %s700 = sand.u32 %s127, 1
        %s701 = smul.addr %s700, 128
        %s702 = scalar_lea.vmem [#allocation8], %s701
        %s703 = sand.u32 %s155, 1
        %s704 = scalar_lea.sflag [#allocation10], %s703
        %s705 = sand.u32 %s155, 1
        %s706 = scalar_lea.vmem [#allocation9], %s705
        // Predicated region
        $region53: #{tpu_custom_call.1} parent=31 // pred_check
          %p707 = pneg %p137
        $region54: #{tpu_custom_call.1} parent=31 // pred_check_branch
          %709 = sbr.rel (%p707) target = $region56
        $region55: #{tpu_custom_call.1} parent=31 // pred_region
          %s711 = ssub.s32 2048, 2048
          %712 = vsyncadd %s699, %s711
          %s713 = smul.addr %s32, 16
          %s714 = smul.addr %s31, 32
          %s715 = sadd.s32 %s713, %s714
          %s716 = smul.addr %s715, 128
          %s717 = scalar_lea.hbm %s3, %s716
          %s718 = sshll.u32 %s702, 4
          %s719 = int_to_ptr.vmem [resolvable:$true] %s718
          %724 = dma.vmem_to_hbm [thread:$0]  %s719, 2048, %s717, %s699, 128, 128, 8
        $region56: #{tpu_custom_call.1} parent=31 // pred_fallthru
          _
        // Predicated region
        $region57: #{tpu_custom_call.1} parent=31 // pred_check
          %p725 = pneg %p165
        $region58: #{tpu_custom_call.1} parent=31 // pred_check_branch
          %727 = sbr.rel (%p725) target = $region60
        $region59: #{tpu_custom_call.1} parent=31 // pred_region
          %s729 = ssub.s32 16, 16
          %730 = vsyncadd %s704, %s729
          %s731 = smul.addr %s31, 2
          %s732 = sadd.s32 %s32, %s731
          %s733 = smul.addr %s732, 16
          %s734 = scalar_lea.hbm %s4, %s733
          %s736 = sshll.u32 %s706, 4
          %s737 = int_to_ptr.vmem [resolvable:$true] %s736
          %739 = dma.vmem_to_hbm [thread:$0]  %s737, 16, %s734, %s704
        $region60: #{tpu_custom_call.1} parent=31 // pred_fallthru
          _
      $region32: #{tpu_custom_call.1} parent=5 // pred_fallthru
        _
      %p740 = scmp.le.s32.totalorder 2, %s21
      // Predicated region
      $region61: #{tpu_custom_call.1} parent=5 // pred_check
        %p741 = pneg %p740
      $region62: #{tpu_custom_call.1} parent=5 // pred_check_branch
        %743 = sbr.rel (%p741) target = $region64
      $region63: #{tpu_custom_call.1} parent=5 // pred_region
        %s744 = ssub.s32 %s21, 2
        // Predicated region
        $region65: #{tpu_custom_call.1} parent=63 // pred_check
          %p745 = pneg %p143
        $region66: #{tpu_custom_call.1} parent=63 // pred_check_branch
          %747 = sbr.rel (%p745) target = $region68
        $region67: #{tpu_custom_call.1} parent=63 // pred_region
          %s748 = sand.u32 %s128, 1
          %s749 = scalar_lea.sflag [#allocation4], %s748
          %s750 = sand.u32 %s128, 1
          %s751 = smul.addr %s750, 128
          %s752 = scalar_lea.vmem [#allocation8], %s751
          %753 = dma.done %s749, 2048
        $region68: #{tpu_custom_call.1} parent=63 // pred_fallthru
          _
        // Predicated region
        $region69: #{tpu_custom_call.1} parent=63 // pred_check
          %p754 = pneg %p171
        $region70: #{tpu_custom_call.1} parent=63 // pred_check_branch
          %756 = sbr.rel (%p754) target = $region72
        $region71: #{tpu_custom_call.1} parent=63 // pred_region
          %s757 = sand.u32 %s156, 1
          %s758 = scalar_lea.sflag [#allocation10], %s757
          %s759 = sand.u32 %s156, 1
          %s760 = scalar_lea.vmem [#allocation9], %s759
          %761 = dma.done %s758, 16
        $region72: #{tpu_custom_call.1} parent=63 // pred_fallthru
          _
      $region64: #{tpu_custom_call.1} parent=5 // pred_fallthru
        _
    $region6: #{tpu_custom_call.1} parent=1 // loop_footer
      %s25 = sadd.s32 1, %s21
    $region7: #{tpu_custom_call.1} parent=1 // loop_footer_branch
      %20 = sbr.rel target = $region3
    $region8: #{tpu_custom_call.1} parent=1 // loop_exit
      _
    %762 = vsyncpa [#allocation3], 1
    %s763 = scalar_lea.sflag [#allocation3], 1
    %764 = vsyncpa %s763, 1
    %765 = vsyncpa [#allocation6], 1
    %766 = vsyncpa [#allocation4], 1
    %s767 = scalar_lea.sflag [#allocation4], 1
    %768 = vsyncpa %s767, 1
    %769 = vsyncpa [#allocation10], 1
    %s770 = scalar_lea.sflag [#allocation10], 1
    %771 = vsyncpa %s770, 1

</llo_original>
